<compile_context>
chip_gen: v6e
topology: v6e:2x2x1
jax: 0.10.0
libtpu: 0.0.40
codegen_flags: <defaults>
</compile_context>

<pallas_src>
import functools

import jax
import jax.numpy as jnp
from jax.experimental import pallas as pl
from jax.experimental.pallas import tpu as pltpu

# Batch-tile cap. 2048 keeps total VMEM use well inside the default scoped
# limit on every generation; sweep {2048, 4096, 8192} (with a larger
# vmem_limit_bytes) if tuning for a specific chip.
MAX_BM = 2048


def _mlp_kernel(x_ref, w1_ref, b1_ref, w2_ref, b2_ref, w3_ref, b3_ref,
                w4_ref, b4_ref, o_ref):
    # x_ref : (bm, 100) f32  (batch on sublanes, features on lanes)
    # w*_ref: (in, out) f32  (nn.Linear weights pre-transposed once)
    # b*_ref: (1, out)  f32
    # o_ref : (bm, 1)   f32
    x = x_ref[...]

    h = jnp.dot(x, w1_ref[...], preferred_element_type=jnp.float32)   # (bm,64)
    h = jnp.maximum(h + b1_ref[...], 0.0)
    h = jnp.dot(h, w2_ref[...], preferred_element_type=jnp.float32)   # (bm,32)
    h = jnp.maximum(h + b2_ref[...], 0.0)
    h = jnp.dot(h, w3_ref[...], preferred_element_type=jnp.float32)   # (bm,16)
    h = jnp.maximum(h + b3_ref[...], 0.0)

    # Layer 4: (bm,16) . (16,) -> (bm,1) as a VPU weighted sum; a 1-column MXU
    # matmul would just drain the pipe for ~no work.
    logits = jnp.sum(h * w4_ref[...], axis=-1, keepdims=True) + b4_ref[...]
    o_ref[...] = jax.nn.sigmoid(logits).astype(o_ref.dtype)


def prepare_params(params):
    """One-time parameter prep (do NOT run per forward call):
    transpose weights to (in, out) for the batch-major x @ W layout and
    reshape biases to broadcastable rows."""
    w1, b1, w2, b2, w3, b3, w4, b4 = params
    return (
        jnp.asarray(w1).T, jnp.asarray(b1).reshape(1, -1),   # (100,64), (1,64)
        jnp.asarray(w2).T, jnp.asarray(b2).reshape(1, -1),   # (64,32),  (1,32)
        jnp.asarray(w3).T, jnp.asarray(b3).reshape(1, -1),   # (32,16),  (1,16)
        jnp.asarray(w4).reshape(1, -1),                      # (1,16) row for VPU sum
        jnp.asarray(b4).reshape(1, -1),                      # (1,1)
    )


def _round_up(n, m):
    return ((n + m - 1) // m) * m


def _choose_bm(B, max_bm=MAX_BM):
    """Adaptive batch tile: amortize the ~0.35us per-grid-step overhead, keep
    padding tiny for small B, and use >= 2 balanced tiles when there is enough
    work so the 'parallel' axis can shard across both TensorCores on v7x."""
    n_tiles = pl.cdiv(B, max_bm)
    if n_tiles < 2 and B >= 1024:
        n_tiles = 2
    return _round_up(pl.cdiv(B, n_tiles), 8)


@functools.partial(jax.jit, static_argnames=("bm",))
def _forward(x, w1t, b1, w2t, b2, w3t, b3, w4r, b4, *, bm):
    B, F = x.shape
    n_tiles = pl.cdiv(B, bm)
    B_pad = n_tiles * bm
    if B_pad != B:
        # Only the (small) ragged tail is padded; padded rows are sliced off.
        x = jnp.pad(x, ((0, B_pad - B), (0, 0)))

    def invariant(shape):
        # Whole array, same block every grid step (fetched once, kept resident).
        return pl.BlockSpec(shape, lambda i: (0, 0))

    out = pl.pallas_call(
        _mlp_kernel,
        out_shape=jax.ShapeDtypeStruct((B_pad, 1), jnp.float32),
        grid_spec=pltpu.PrefetchScalarGridSpec(
            num_scalar_prefetch=0,
            grid=(n_tiles,),
            in_specs=[
                pl.BlockSpec((bm, F), lambda i: (i, 0)),   # x: contiguous row tiles
                invariant(w1t.shape), invariant(b1.shape),
                invariant(w2t.shape), invariant(b2.shape),
                invariant(w3t.shape), invariant(b3.shape),
                invariant(w4r.shape), invariant(b4.shape),
            ],
            out_specs=pl.BlockSpec((bm, 1), lambda i: (i, 0)),
        ),
        compiler_params=pltpu.CompilerParams(
            dimension_semantics=("parallel",)),   # shards tiles across TCs on v7x
    )(x, w1t, b1, w2t, b2, w3t, b3, w4r, b4)

    return out[:B]


def detect_spam_v0(x, prepared, *, bm=None):
    """x: (B, 100) float32 -> (B, 1) float32 (inference; dropout = identity).
    `prepared` must come from prepare_params(raw_params)."""
    B, F = x.shape
    assert F == 100
    if bm is None:
        bm = _choose_bm(B)
    return _forward(x, *prepared, bm=bm)


def init_params(key):
    """Deterministic init matching nn.Linear's U(-1/sqrt(fan_in), 1/sqrt(fan_in)).
    Weights stored in native torch layout: (out_features, in_features)."""
    dims = [(100, 64), (64, 32), (32, 16), (16, 1)]
    params = []
    for fan_in, fan_out in dims:
        key, kw, kb = jax.random.split(key, 3)
        bound = 1.0 / float(jnp.sqrt(float(fan_in)))
        w = jax.random.uniform(kw, (fan_out, fan_in), jnp.float32, -bound, bound)
        b = jax.random.uniform(kb, (fan_out,), jnp.float32, -bound, bound)
        params += [w, b]
    return tuple(params)


def reference(x, params):
    w1, b1, w2, b2, w3, b3, w4, b4 = params
    h = jnp.maximum(x @ w1.T + b1, 0.0)
    h = jnp.maximum(h @ w2.T + b2, 0.0)
    h = jnp.maximum(h @ w3.T + b3, 0.0)
    return jax.nn.sigmoid(h @ w4.T + b4)


if __name__ == "__main__":
    key = jax.random.PRNGKey(0)
    kx, kp = jax.random.split(key)
    params = init_params(kp)
    prepared = prepare_params(params)

    # Small batch (single tile, no padding).
    B = 8
    x = jax.random.normal(kx, (B, 100), jnp.float32)
    out = jax.block_until_ready(detect_spam_v0(x, prepared))
    ref = reference(x, params)
    assert out.shape == (B, 1)
    # f32 end-to-end; small tolerance only for MXU pass-decomposition rounding.
    assert jnp.allclose(out, ref, atol=2e-3, rtol=0.0), "mismatch vs reference (B=8)"

    # Ragged batch (exercises the padded-tail path).
    B2 = 37
    x2 = jax.random.normal(jax.random.fold_in(kx, 1), (B2, 100), jnp.float32)
    out2 = jax.block_until_ready(detect_spam_v0(x2, prepared))
    ref2 = reference(x2, params)
    assert out2.shape == (B2, 1)
    assert jnp.allclose(out2, ref2, atol=2e-3, rtol=0.0), "mismatch vs reference (B=37)"

    print("KERNEL_OK")
</pallas_src>

<mosaic_0001>
module attributes {stable_mosaic.version = 11 : i64} {
  func.func @_mlp_kernel(%arg0: i32, %arg1: memref<8x100xf32, #tpu.memory_space<vmem>>, %arg2: memref<100x64xf32, #tpu.memory_space<vmem>>, %arg3: memref<1x64xf32, #tpu.memory_space<vmem>>, %arg4: memref<64x32xf32, #tpu.memory_space<vmem>>, %arg5: memref<1x32xf32, #tpu.memory_space<vmem>>, %arg6: memref<32x16xf32, #tpu.memory_space<vmem>>, %arg7: memref<1x16xf32, #tpu.memory_space<vmem>>, %arg8: memref<1x16xf32, #tpu.memory_space<vmem>>, %arg9: memref<1x1xf32, #tpu.memory_space<vmem>>, %arg10: memref<8x1xf32, #tpu.memory_space<vmem>>) attributes {dimension_semantics = [#tpu.dimension_semantics<parallel>], iteration_bounds = array<i64: 1>, scalar_prefetch = 0 : i64, scratch_operands = 0 : i64, tpu.core_type = #tpu.core_type<tc>, window_params = [{transform_indices = @transform_0, window_bounds = array<i64: 8, 100>}, {pipeline_mode = #tpu.pipeline_mode<synchronous>, transform_indices = @transform_1, window_bounds = array<i64: 100, 64>}, {pipeline_mode = #tpu.pipeline_mode<synchronous>, transform_indices = @transform_2, window_bounds = array<i64: 1, 64>}, {pipeline_mode = #tpu.pipeline_mode<synchronous>, transform_indices = @transform_3, window_bounds = array<i64: 64, 32>}, {pipeline_mode = #tpu.pipeline_mode<synchronous>, transform_indices = @transform_4, window_bounds = array<i64: 1, 32>}, {pipeline_mode = #tpu.pipeline_mode<synchronous>, transform_indices = @transform_5, window_bounds = array<i64: 32, 16>}, {pipeline_mode = #tpu.pipeline_mode<synchronous>, transform_indices = @transform_6, window_bounds = array<i64: 1, 16>}, {pipeline_mode = #tpu.pipeline_mode<synchronous>, transform_indices = @transform_7, window_bounds = array<i64: 1, 16>}, {pipeline_mode = #tpu.pipeline_mode<synchronous>, transform_indices = @transform_8, window_bounds = array<i64: 1, 1>}, {transform_indices = @transform_9, window_bounds = array<i64: 8, 1>}]} {
    %c0 = arith.constant 0 : index
    %c0_0 = arith.constant 0 : index
    %0 = vector.load %arg1[%c0, %c0_0] : memref<8x100xf32, #tpu.memory_space<vmem>>, vector<8x100xf32>
    %c0_1 = arith.constant 0 : index
    %c0_2 = arith.constant 0 : index
    %1 = vector.load %arg2[%c0_1, %c0_2] : memref<100x64xf32, #tpu.memory_space<vmem>>, vector<100x64xf32>
    %cst = arith.constant dense<0.000000e+00> : vector<8x64xf32>
    %2 = tpu.matmul %0, %1, %cst {dimension_numbers = #tpu.dot_dimension_numbers<[1], [0], [0], [1], [0, 0, 1, 1], [], []>} : vector<8x100xf32>, vector<100x64xf32>, vector<8x64xf32> -> vector<8x64xf32>
    %c0_3 = arith.constant 0 : index
    %c0_4 = arith.constant 0 : index
    %3 = vector.load %arg3[%c0_3, %c0_4] : memref<1x64xf32, #tpu.memory_space<vmem>>, vector<1x64xf32>
    %4 = vector.broadcast %3 : vector<1x64xf32> to vector<8x64xf32>
    %5 = arith.addf %2, %4 : vector<8x64xf32>
    %cst_5 = arith.constant 0.000000e+00 : f32
    %6 = vector.broadcast %cst_5 : f32 to vector<8x64xf32>
    %7 = arith.maximumf %5, %6 : vector<8x64xf32>
    %c0_6 = arith.constant 0 : index
    %c0_7 = arith.constant 0 : index
    %8 = vector.load %arg4[%c0_6, %c0_7] : memref<64x32xf32, #tpu.memory_space<vmem>>, vector<64x32xf32>
    %cst_8 = arith.constant dense<0.000000e+00> : vector<8x32xf32>
    %9 = tpu.matmul %7, %8, %cst_8 {dimension_numbers = #tpu.dot_dimension_numbers<[1], [0], [0], [1], [0, 0, 1, 1], [], []>} : vector<8x64xf32>, vector<64x32xf32>, vector<8x32xf32> -> vector<8x32xf32>
    %c0_9 = arith.constant 0 : index
    %c0_10 = arith.constant 0 : index
    %10 = vector.load %arg5[%c0_9, %c0_10] : memref<1x32xf32, #tpu.memory_space<vmem>>, vector<1x32xf32>
    %11 = vector.broadcast %10 : vector<1x32xf32> to vector<8x32xf32>
    %12 = arith.addf %9, %11 : vector<8x32xf32>
    %cst_11 = arith.constant 0.000000e+00 : f32
    %13 = vector.broadcast %cst_11 : f32 to vector<8x32xf32>
    %14 = arith.maximumf %12, %13 : vector<8x32xf32>
    %c0_12 = arith.constant 0 : index
    %c0_13 = arith.constant 0 : index
    %15 = vector.load %arg6[%c0_12, %c0_13] : memref<32x16xf32, #tpu.memory_space<vmem>>, vector<32x16xf32>
    %cst_14 = arith.constant dense<0.000000e+00> : vector<8x16xf32>
    %16 = tpu.matmul %14, %15, %cst_14 {dimension_numbers = #tpu.dot_dimension_numbers<[1], [0], [0], [1], [0, 0, 1, 1], [], []>} : vector<8x32xf32>, vector<32x16xf32>, vector<8x16xf32> -> vector<8x16xf32>
    %c0_15 = arith.constant 0 : index
    %c0_16 = arith.constant 0 : index
    %17 = vector.load %arg7[%c0_15, %c0_16] : memref<1x16xf32, #tpu.memory_space<vmem>>, vector<1x16xf32>
    %18 = vector.broadcast %17 : vector<1x16xf32> to vector<8x16xf32>
    %19 = arith.addf %16, %18 : vector<8x16xf32>
    %cst_17 = arith.constant 0.000000e+00 : f32
    %20 = vector.broadcast %cst_17 : f32 to vector<8x16xf32>
    %21 = arith.maximumf %19, %20 : vector<8x16xf32>
    %c0_18 = arith.constant 0 : index
    %c0_19 = arith.constant 0 : index
    %22 = vector.load %arg8[%c0_18, %c0_19] : memref<1x16xf32, #tpu.memory_space<vmem>>, vector<1x16xf32>
    %23 = vector.broadcast %22 : vector<1x16xf32> to vector<8x16xf32>
    %24 = arith.mulf %21, %23 : vector<8x16xf32>
    %cst_20 = arith.constant dense<0.000000e+00> : vector<8xf32>
    %25 = vector.multi_reduction <add>, %24, %cst_20 [1] : vector<8x16xf32> to vector<8xf32>
    %26 = vector.shape_cast %25 : vector<8xf32> to vector<8x1xf32>
    %c0_21 = arith.constant 0 : index
    %c0_22 = arith.constant 0 : index
    %27 = vector.load %arg9[%c0_21, %c0_22] : memref<1x1xf32, #tpu.memory_space<vmem>>, vector<1x1xf32>
    %28 = vector.broadcast %27 : vector<1x1xf32> to vector<8x1xf32>
    %29 = arith.addf %26, %28 : vector<8x1xf32>
    %30 = arith.negf %29 : vector<8x1xf32>
    %31 = math.exp %30 : vector<8x1xf32>
    %cst_23 = arith.constant 1.000000e+00 : f32
    %32 = vector.broadcast %cst_23 : f32 to vector<8x1xf32>
    %33 = arith.addf %32, %31 : vector<8x1xf32>
    %34 = arith.divf %32, %33 : vector<8x1xf32>
    %c0_24 = arith.constant 0 : index
    %c0_25 = arith.constant 0 : index
    %35 = vector.load %arg10[%c0_24, %c0_25] : memref<8x1xf32, #tpu.memory_space<vmem>>, vector<8x1xf32>
    tpu.vector_store %arg10[%c0_24, %c0_25], %34 {strides = array<i32>} : memref<8x1xf32, #tpu.memory_space<vmem>>, vector<8x1xf32>,
    return
  }
  func.func @transform_0(%arg0: i32) -> (i32, i32) {
    %c0_i32 = arith.constant 0 : i32
    %c0_i32_0 = arith.constant 0 : i32
    return %arg0, %c0_i32 : i32, i32
  }
  func.func @transform_1(%arg0: i32) -> (i32, i32) {
    %c0_i32 = arith.constant 0 : i32
    %c0_i32_0 = arith.constant 0 : i32
    %c0_i32_1 = arith.constant 0 : i32
    return %c0_i32, %c0_i32_0 : i32, i32
  }
  func.func @transform_2(%arg0: i32) -> (i32, i32) {
    %c0_i32 = arith.constant 0 : i32
    %c0_i32_0 = arith.constant 0 : i32
    %c0_i32_1 = arith.constant 0 : i32
    return %c0_i32, %c0_i32_0 : i32, i32
  }
  func.func @transform_3(%arg0: i32) -> (i32, i32) {
    %c0_i32 = arith.constant 0 : i32
    %c0_i32_0 = arith.constant 0 : i32
    %c0_i32_1 = arith.constant 0 : i32
    return %c0_i32, %c0_i32_0 : i32, i32
  }
  func.func @transform_4(%arg0: i32) -> (i32, i32) {
    %c0_i32 = arith.constant 0 : i32
    %c0_i32_0 = arith.constant 0 : i32
    %c0_i32_1 = arith.constant 0 : i32
    return %c0_i32, %c0_i32_0 : i32, i32
  }
  func.func @transform_5(%arg0: i32) -> (i32, i32) {
    %c0_i32 = arith.constant 0 : i32
    %c0_i32_0 = arith.constant 0 : i32
    %c0_i32_1 = arith.constant 0 : i32
    return %c0_i32, %c0_i32_0 : i32, i32
  }
  func.func @transform_6(%arg0: i32) -> (i32, i32) {
    %c0_i32 = arith.constant 0 : i32
    %c0_i32_0 = arith.constant 0 : i32
    %c0_i32_1 = arith.constant 0 : i32
    return %c0_i32, %c0_i32_0 : i32, i32
  }
  func.func @transform_7(%arg0: i32) -> (i32, i32) {
    %c0_i32 = arith.constant 0 : i32
    %c0_i32_0 = arith.constant 0 : i32
    %c0_i32_1 = arith.constant 0 : i32
    return %c0_i32, %c0_i32_0 : i32, i32
  }
  func.func @transform_8(%arg0: i32) -> (i32, i32) {
    %c0_i32 = arith.constant 0 : i32
    %c0_i32_0 = arith.constant 0 : i32
    %c0_i32_1 = arith.constant 0 : i32
    return %c0_i32, %c0_i32_0 : i32, i32
  }
  func.func @transform_9(%arg0: i32) -> (i32, i32) {
    %c0_i32 = arith.constant 0 : i32
    %c0_i32_0 = arith.constant 0 : i32
    return %arg0, %c0_i32 : i32, i32
  }
}

</mosaic_0001>

<llo_original>
// kernel: _forward.1
$region0: #{_forward.1}
  #allocation0 [shape = 'u32[]', space=smem, size = 0x4, offset = 0x4, fixed_abs, tag = 'smem constant byte address 0x4 - core index']
  #allocation1 [shape = 'u32[144,128]{1,0:T(1,128)}', space=vmem, size = 0x12000, scoped, tag = 'internal scratch']
  #allocation2 [shape = 'f32[1,1]{1,0:T(1,128)S(1)}', space=vmem, size = 0x200, scoped, tag = 'scoped memory for _forward.1']
  %s0 = inlined_call_operand.vmem [shape: f32[8,100], index: 0, kind: input, shape index: {}]
  %s1 = inlined_call_operand.vmem [shape: f32[100,64], index: 1, kind: input, shape index: {}]
  %s2 = inlined_call_operand.vmem [shape: f32[1,64], index: 2, kind: input, shape index: {}]
  %s3 = inlined_call_operand.vmem [shape: f32[64,32], index: 3, kind: input, shape index: {}]
  %s4 = inlined_call_operand.vmem [shape: f32[1,32], index: 4, kind: input, shape index: {}]
  %s5 = inlined_call_operand.vmem [shape: f32[32,16], index: 5, kind: input, shape index: {}]
  %s6 = inlined_call_operand.vmem [shape: f32[1,16], index: 6, kind: input, shape index: {}]
  %s7 = inlined_call_operand.vmem [shape: f32[1,16], index: 7, kind: input, shape index: {}]
  %s8 = inlined_call_operand.<no memory space> [shape: f32[1,1], index: 8, kind: input, shape index: {}]
  %s9 = inlined_call_operand.vmem [shape: f32[8,1], index: 9, kind: output, shape index: {}]
  %s10 = sld [smem:[#allocation0]]
  $region46: #{_forward.1} parent=0
    _
  %s12 = ssub.s32 1, %s10
  %s13 = scalar_select 0, %s12, %s10
  %v14 = vstv %s8
  %15 = vst [vmem:[#allocation2] sm:$0x1] %v14
  // Predicated region
  $region2: #{_forward.1} parent=0 // pred_check
    _
  $region3: #{_forward.1} parent=0 // pred_check_branch
    %17 = sbr.rel (0) target = $region5
  $region4: #{_forward.1} parent=0 // pred_region
    _
  $region5: #{_forward.1} parent=0 // pred_fallthru
    _
  // Predicated region
  $region6: #{_forward.1} parent=0 // pred_check
    _
  $region7: #{_forward.1} parent=0 // pred_check_branch
    %19 = sbr.rel (0) target = $region9
  $region8: #{_forward.1} parent=0 // pred_region
    _
  $region9: #{_forward.1} parent=0 // pred_fallthru
    _
  // Predicated region
  $region10: #{_forward.1} parent=0 // pred_check
    _
  $region11: #{_forward.1} parent=0 // pred_check_branch
    %21 = sbr.rel (0) target = $region13
  $region12: #{_forward.1} parent=0 // pred_region
    _
  $region13: #{_forward.1} parent=0 // pred_fallthru
    _
  // Predicated region
  $region14: #{_forward.1} parent=0 // pred_check
    _
  $region15: #{_forward.1} parent=0 // pred_check_branch
    %23 = sbr.rel (0) target = $region17
  $region16: #{_forward.1} parent=0 // pred_region
    _
  $region17: #{_forward.1} parent=0 // pred_fallthru
    _
  // Predicated region
  $region18: #{_forward.1} parent=0 // pred_check
    _
  $region19: #{_forward.1} parent=0 // pred_check_branch
    %25 = sbr.rel (0) target = $region21
  $region20: #{_forward.1} parent=0 // pred_region
    _
  $region21: #{_forward.1} parent=0 // pred_fallthru
    _
  // Predicated region
  $region22: #{_forward.1} parent=0 // pred_check
    _
  $region23: #{_forward.1} parent=0 // pred_check_branch
    %27 = sbr.rel (0) target = $region25
  $region24: #{_forward.1} parent=0 // pred_region
    _
  $region25: #{_forward.1} parent=0 // pred_fallthru
    _
  // Predicated region
  $region26: #{_forward.1} parent=0 // pred_check
    _
  $region27: #{_forward.1} parent=0 // pred_check_branch
    %29 = sbr.rel (0) target = $region29
  $region28: #{_forward.1} parent=0 // pred_region
    _
  $region29: #{_forward.1} parent=0 // pred_fallthru
    _
  // Predicated region
  $region30: #{_forward.1} parent=0 // pred_check
    _
  $region31: #{_forward.1} parent=0 // pred_check_branch
    %31 = sbr.rel (0) target = $region33
  $region32: #{_forward.1} parent=0 // pred_region
    _
  $region33: #{_forward.1} parent=0 // pred_fallthru
    _
  // Predicated region
  $region34: #{_forward.1} parent=0 // pred_check
    _
  $region35: #{_forward.1} parent=0 // pred_check_branch
    %33 = sbr.rel (0) target = $region37
  $region36: #{_forward.1} parent=0 // pred_region
    _
  $region37: #{_forward.1} parent=0 // pred_fallthru
    _
  %v34 = vld [vmem:[%s0] sm:$0xff]
  %v35 = vld [vmem:[%s1] sm:$0xff]
  %v36 = vld [vmem:[%s1 + $0x8] sm:$0xff]
  %v37 = vld [vmem:[%s1 + $0x10] sm:$0xff]
  %v38 = vld [vmem:[%s1 + $0x18] sm:$0xff]
  %v39 = vld [vmem:[%s1 + $0x20] sm:$0xff]
  %v40 = vld [vmem:[%s1 + $0x28] sm:$0xff]
  %v41 = vld [vmem:[%s1 + $0x30] sm:$0xff]
  %v42 = vld [vmem:[%s1 + $0x38] sm:$0xff]
  %v43 = vld [vmem:[%s1 + $0x40] sm:$0xff]
  %v44 = vld [vmem:[%s1 + $0x48] sm:$0xff]
  %v45 = vld [vmem:[%s1 + $0x50] sm:$0xff]
  %v46 = vld [vmem:[%s1 + $0x58] sm:$0xff]
  %v47 = vld [vmem:[%s1 + $0x60] sm:$0xf]
  %v48 = vld [vmem:[%s2] sm:$0x1]
  %v50 = vlaneseq
  %v51 = vshrl.u32 %v50, 7
  %v52 = vsub.s32 0, %v51
  %v53 = vrot.slane %v48, %v52
  %vm55 = vcmask 818176
  %v57 = vsel %vm55, %v34, 0
  %vm59 = vcmask 1043456
  %v61 = vsel %vm59, %v47, 0
  %63 = vmatprep.subr.mxu0 0.0
  %64 = vmatpush1.msra.mxu0 0.0
  %65 = vmatprep.subr.mxu0 0.0
  %66 = vmatpush1.msra.mxu0 0.0
  %67 = vmatprep.subr.mxu0 0.0
  %68 = vmatpush1.msra.mxu0 0.0
  %69 = vmatprep.subr.mxu0 0.0
  %70 = vmatpush1.msra.mxu0 %v61
  %71 = vmatprep.subr.mxu0 0.0
  %72 = vmatpush1.msra.mxu0 %v46
  %73 = vmatprep.subr.mxu0 0.0
  %74 = vmatpush1.msra.mxu0 %v45
  %75 = vmatprep.subr.mxu0 0.0
  %76 = vmatpush1.msra.mxu0 %v44
  %77 = vmatprep.subr.mxu0 0.0
  %78 = vmatpush1.msra.mxu0 %v43
  %79 = vmatprep.subr.mxu0 0.0
  %80 = vmatpush1.msra.mxu0 %v42
  %81 = vmatprep.subr.mxu0 0.0
  %82 = vmatpush1.msra.mxu0 %v41
  %83 = vmatprep.subr.mxu0 0.0
  %84 = vmatpush1.msra.mxu0 %v40
  %85 = vmatprep.subr.mxu0 0.0
  %86 = vmatpush1.msra.mxu0 %v39
  %87 = vmatprep.subr.mxu0 0.0
  %88 = vmatpush1.msra.mxu0 %v38
  %89 = vmatprep.subr.mxu0 0.0
  %90 = vmatpush1.msra.mxu0 %v37
  %91 = vmatprep.subr.mxu0 0.0
  %92 = vmatpush1.msra.mxu0 %v36
  %93 = vmatprep.subr.mxu0 0.0
  %94 = vmatpush1.msra.mxu0 %v35
  %95 = vmatprep.subr.mxu0 0.0
  %96 = vmatpush2.msra.mxu0 0.0
  %97 = vmatprep.subr.mxu0 0.0
  %98 = vmatpush2.msra.mxu0 0.0
  %99 = vmatprep.subr.mxu0 0.0
  %100 = vmatpush2.msra.mxu0 0.0
  %101 = vmatprep.subr.mxu0 0.0
  %102 = vmatpush2.msra.mxu0 0.0
  %103 = vmatprep.subr.mxu0 0.0
  %104 = vmatpush2.msra.mxu0 0.0
  %105 = vmatprep.subr.mxu0 0.0
  %106 = vmatpush2.msra.mxu0 0.0
  %107 = vmatprep.subr.mxu0 0.0
  %108 = vmatpush2.msra.mxu0 0.0
  %109 = vmatprep.subr.mxu0 0.0
  %110 = vmatpush2.msra.mxu0 0.0
  %111 = vmatprep.subr.mxu0 0.0
  %112 = vmatpush2.msra.mxu0 0.0
  %113 = vmatprep.subr.mxu0 0.0
  %114 = vmatpush2.msra.mxu0 0.0
  %115 = vmatprep.subr.mxu0 0.0
  %116 = vmatpush2.msra.mxu0 0.0
  %117 = vmatprep.subr.mxu0 0.0
  %118 = vmatpush2.msra.mxu0 0.0
  %119 = vmatprep.subr.mxu0 0.0
  %120 = vmatpush2.msra.mxu0 0.0
  %121 = vmatprep.subr.mxu0 0.0
  %122 = vmatpush2.msra.mxu0 0.0
  %123 = vmatprep.subr.mxu0 0.0
  %124 = vmatpush2.msra.mxu0 0.0
  %125 = vmatprep.subr.mxu0 0.0
  %126 = vmatpush2.msra.mxu0 0.0
  %127 = vmatprep.mubr.f32.mxu0 0.0
  %128 = vmatmul.mubr.f32.gmra.mxu0 %v57
  %v129 = vpop.f32.mrf.mxu0
  %v130 = vadd.f32 %v53, %v129
  %v131 = vpop.f32.mrf.mxu0
  %132 = vdwg.mxu0
  %v133 = vmax.f32 %v130, 0.0
  %v134 = vld [vmem:[%s3] sm:$0xff]
  %v135 = vld [vmem:[%s3 + $0x8] sm:$0xff]
  %v136 = vld [vmem:[%s3 + $0x10] sm:$0xff]
  %v137 = vld [vmem:[%s3 + $0x18] sm:$0xff]
  %v138 = vld [vmem:[%s3 + $0x20] sm:$0xff]
  %v139 = vld [vmem:[%s3 + $0x28] sm:$0xff]
  %v140 = vld [vmem:[%s3 + $0x30] sm:$0xff]
  %v141 = vld [vmem:[%s3 + $0x38] sm:$0xff]
  %v142 = vld [vmem:[%s4] sm:$0x1]
  %v144 = vlaneseq
  %v145 = vshrl.u32 %v144, 7
  %v146 = vsub.s32 0, %v145
  %v147 = vrot.slane %v142, %v146
  %vm149 = vcmask 523264
  %v151 = vsel %vm149, %v133, 0
  %153 = vmatprep.subr.mxu0 0.0
  %154 = vmatpush1.msra.mxu0 0.0
  %155 = vmatprep.subr.mxu0 0.0
  %156 = vmatpush1.msra.mxu0 0.0
  %157 = vmatprep.subr.mxu0 0.0
  %158 = vmatpush1.msra.mxu0 0.0
  %159 = vmatprep.subr.mxu0 0.0
  %160 = vmatpush1.msra.mxu0 0.0
  %161 = vmatprep.subr.mxu0 0.0
  %162 = vmatpush1.msra.mxu0 0.0
  %163 = vmatprep.subr.mxu0 0.0
  %164 = vmatpush1.msra.mxu0 0.0
  %165 = vmatprep.subr.mxu0 0.0
  %166 = vmatpush1.msra.mxu0 0.0
  %167 = vmatprep.subr.mxu0 0.0
  %168 = vmatpush1.msra.mxu0 0.0
  %169 = vmatprep.subr.mxu0 0.0
  %170 = vmatpush1.msra.mxu0 %v141
  %171 = vmatprep.subr.mxu0 0.0
  %172 = vmatpush1.msra.mxu0 %v140
  %173 = vmatprep.subr.mxu0 0.0
  %174 = vmatpush1.msra.mxu0 %v139
  %175 = vmatprep.subr.mxu0 0.0
  %176 = vmatpush1.msra.mxu0 %v138
  %177 = vmatprep.subr.mxu0 0.0
  %178 = vmatpush1.msra.mxu0 %v137
  %179 = vmatprep.subr.mxu0 0.0
  %180 = vmatpush1.msra.mxu0 %v136
  %181 = vmatprep.subr.mxu0 0.0
  %182 = vmatpush1.msra.mxu0 %v135
  %183 = vmatprep.subr.mxu0 0.0
  %184 = vmatpush1.msra.mxu0 %v134
  %185 = vmatprep.subr.mxu0 0.0
  %186 = vmatpush2.msra.mxu0 0.0
  %187 = vmatprep.subr.mxu0 0.0
  %188 = vmatpush2.msra.mxu0 0.0
  %189 = vmatprep.subr.mxu0 0.0
  %190 = vmatpush2.msra.mxu0 0.0
  %191 = vmatprep.subr.mxu0 0.0
  %192 = vmatpush2.msra.mxu0 0.0
  %193 = vmatprep.subr.mxu0 0.0
  %194 = vmatpush2.msra.mxu0 0.0
  %195 = vmatprep.subr.mxu0 0.0
  %196 = vmatpush2.msra.mxu0 0.0
  %197 = vmatprep.subr.mxu0 0.0
  %198 = vmatpush2.msra.mxu0 0.0
  %199 = vmatprep.subr.mxu0 0.0
  %200 = vmatpush2.msra.mxu0 0.0
  %201 = vmatprep.subr.mxu0 0.0
  %202 = vmatpush2.msra.mxu0 0.0
  %203 = vmatprep.subr.mxu0 0.0
  %204 = vmatpush2.msra.mxu0 0.0
  %205 = vmatprep.subr.mxu0 0.0
  %206 = vmatpush2.msra.mxu0 0.0
  %207 = vmatprep.subr.mxu0 0.0
  %208 = vmatpush2.msra.mxu0 0.0
  %209 = vmatprep.subr.mxu0 0.0
  %210 = vmatpush2.msra.mxu0 0.0
  %211 = vmatprep.subr.mxu0 0.0
  %212 = vmatpush2.msra.mxu0 0.0
  %213 = vmatprep.subr.mxu0 0.0
  %214 = vmatpush2.msra.mxu0 0.0
  %215 = vmatprep.subr.mxu0 0.0
  %216 = vmatpush2.msra.mxu0 0.0
  %217 = vmatprep.mubr.f32.mxu0 0.0
  %218 = vmatmul.mubr.f32.gmra.mxu0 %v151
  %v219 = vpop.f32.mrf.mxu0
  %v220 = vadd.f32 %v147, %v219
  %v221 = vpop.f32.mrf.mxu0
  %222 = vdwg.mxu0
  %v223 = vmax.f32 %v220, 0.0
  %v224 = vld [vmem:[%s5] sm:$0xff]
  %v225 = vld [vmem:[%s5 + $0x8] sm:$0xff]
  %v226 = vld [vmem:[%s5 + $0x10] sm:$0xff]
  %v227 = vld [vmem:[%s5 + $0x18] sm:$0xff]
  %v228 = vld [vmem:[%s6] sm:$0x1]
  %v230 = vlaneseq
  %v231 = vshrl.u32 %v230, 7
  %v232 = vsub.s32 0, %v231
  %v233 = vrot.slane %v228, %v232
  %vm235 = vcmask 261120
  %v237 = vsel %vm235, %v223, 0
  %239 = vmatprep.subr.mxu0 0.0
  %240 = vmatpush1.msra.mxu0 0.0
  %241 = vmatprep.subr.mxu0 0.0
  %242 = vmatpush1.msra.mxu0 0.0
  %243 = vmatprep.subr.mxu0 0.0
  %244 = vmatpush1.msra.mxu0 0.0
  %245 = vmatprep.subr.mxu0 0.0
  %246 = vmatpush1.msra.mxu0 0.0
  %247 = vmatprep.subr.mxu0 0.0
  %248 = vmatpush1.msra.mxu0 0.0
  %249 = vmatprep.subr.mxu0 0.0
  %250 = vmatpush1.msra.mxu0 0.0
  %251 = vmatprep.subr.mxu0 0.0
  %252 = vmatpush1.msra.mxu0 0.0
  %253 = vmatprep.subr.mxu0 0.0
  %254 = vmatpush1.msra.mxu0 0.0
  %255 = vmatprep.subr.mxu0 0.0
  %256 = vmatpush1.msra.mxu0 0.0
  %257 = vmatprep.subr.mxu0 0.0
  %258 = vmatpush1.msra.mxu0 0.0
  %259 = vmatprep.subr.mxu0 0.0
  %260 = vmatpush1.msra.mxu0 0.0
  %261 = vmatprep.subr.mxu0 0.0
  %262 = vmatpush1.msra.mxu0 0.0
  %263 = vmatprep.subr.mxu0 0.0
  %264 = vmatpush1.msra.mxu0 %v227
  %265 = vmatprep.subr.mxu0 0.0
  %266 = vmatpush1.msra.mxu0 %v226
  %267 = vmatprep.subr.mxu0 0.0
  %268 = vmatpush1.msra.mxu0 %v225
  %269 = vmatprep.subr.mxu0 0.0
  %270 = vmatpush1.msra.mxu0 %v224
  %271 = vmatprep.subr.mxu0 0.0
  %272 = vmatpush2.msra.mxu0 0.0
  %273 = vmatprep.subr.mxu0 0.0
  %274 = vmatpush2.msra.mxu0 0.0
  %275 = vmatprep.subr.mxu0 0.0
  %276 = vmatpush2.msra.mxu0 0.0
  %277 = vmatprep.subr.mxu0 0.0
  %278 = vmatpush2.msra.mxu0 0.0
  %279 = vmatprep.subr.mxu0 0.0
  %280 = vmatpush2.msra.mxu0 0.0
  %281 = vmatprep.subr.mxu0 0.0
  %282 = vmatpush2.msra.mxu0 0.0
  %283 = vmatprep.subr.mxu0 0.0
  %284 = vmatpush2.msra.mxu0 0.0
  %285 = vmatprep.subr.mxu0 0.0
  %286 = vmatpush2.msra.mxu0 0.0
  %287 = vmatprep.subr.mxu0 0.0
  %288 = vmatpush2.msra.mxu0 0.0
  %289 = vmatprep.subr.mxu0 0.0
  %290 = vmatpush2.msra.mxu0 0.0
  %291 = vmatprep.subr.mxu0 0.0
  %292 = vmatpush2.msra.mxu0 0.0
  %293 = vmatprep.subr.mxu0 0.0
  %294 = vmatpush2.msra.mxu0 0.0
  %295 = vmatprep.subr.mxu0 0.0
  %296 = vmatpush2.msra.mxu0 0.0
  %297 = vmatprep.subr.mxu0 0.0
  %298 = vmatpush2.msra.mxu0 0.0
  %299 = vmatprep.subr.mxu0 0.0
  %300 = vmatpush2.msra.mxu0 0.0
  %301 = vmatprep.subr.mxu0 0.0
  %302 = vmatpush2.msra.mxu0 0.0
  %303 = vmatprep.mubr.f32.mxu0 0.0
  %304 = vmatmul.mubr.f32.gmra.mxu0 %v237
  %v305 = vpop.f32.mrf.mxu0
  %v306 = vadd.f32 %v233, %v305
  %v307 = vpop.f32.mrf.mxu0
  %308 = vdwg.mxu0
  %v309 = vmax.f32 %v306, 0.0
  %v310 = vld [vmem:[%s7] sm:$0x1]
  %v312 = vlaneseq
  %v313 = vshrl.u32 %v312, 7
  %v314 = vsub.s32 0, %v313
  %v315 = vrot.slane %v310, %v314
  %v317 = vmul.f32 %v309, %v315
  %vm318 = vcmask 130048
  %v319 = vsel %vm318, %v317, 0.0
  %320 = vadd.xlane.f32.xlu0 %v319
  %v321 = vpop.xlane.xlu0 %320
  %v322 = vld [vmem:[#allocation2] sm:$0x1]
  %v324 = vlaneseq
  %v325 = vshrl.u32 %v324, 7
  %v326 = vsub.s32 0, %v325
  %v327 = vrot.slane %v322, %v326
  %v329 = vadd.f32 %v321, %v327
  %v330 = vxor.u32 %v329, 2147483648
  %v331 = vmul.f32 %v330, 1.442695
  %v332 = vpow.pop %v331
  %v333 = vadd.f32 %v332, 1.0
  %v334 = vrcp.pop %v333
  %v335 = vmul.f32 1.0, %v334
  %vm336 = vcmask 7168
  %337 = vst.msk [vmem:[%s9] sm:$0xff] %vm336, %v335
  // Predicated region
  $region38: #{_forward.1} parent=0 // pred_check
    _
  $region39: #{_forward.1} parent=0 // pred_check_branch
    %339 = sbr.rel (0) target = $region41
  $region40: #{_forward.1} parent=0 // pred_region
    _
  $region41: #{_forward.1} parent=0 // pred_fallthru
    _
  // Predicated region
  $region42: #{_forward.1} parent=0 // pred_check
    _
  $region43: #{_forward.1} parent=0 // pred_check_branch
    %341 = sbr.rel (0) target = $region45
  $region44: #{_forward.1} parent=0 // pred_region
    _
  $region45: #{_forward.1} parent=0 // pred_fallthru
    _

</llo_original>
